<compile_context>
chip_gen: v6e
topology: v6e:2x2x1
jax: 0.10.0
libtpu: 0.0.40
codegen_flags: <defaults>
</compile_context>

<pallas_src>
import functools

import jax
import jax.numpy as jnp
from jax.experimental import pallas as pl
from jax.experimental.pallas import tpu as pltpu

_LANES = 128
_SUBLANES = 8
_TC = 256          # inner row-chunk == lane width of one output slab row


def _round_up(n: int, m: int) -> int:
    return ((n + m - 1) // m) * m


def _vmem_capacity_bytes() -> int:
    try:
        return int(pltpu.get_tpu_info().vmem_capacity_bytes)
    except Exception:
        return 64 << 20        # conservative: v7x per-TensorCore VMEM


def _mlp_kernel(x_ref, w1t_ref, b1_ref, w2_ref, b2_ref, o_ref, *, tc):
    """One grid step: tm rows of x -> tm scores, written lane-dense.

    x_ref  : (tm, D)        streamed activation rows
    w1t_ref: (H, D)         W1^T, resident
    b1_ref : (H, 1) f32     layer-1 bias column
    w2_ref : (H, 1) f32     layer-2 weight column
    b2_ref : (1,)  f32      SMEM scalar
    o_ref  : (tm//tc, tc)   lane-dense scores
    """
    tm = x_ref.shape[0]
    n_chunks = tm // tc

    w1t = w1t_ref[...]
    b1 = b1_ref[...]
    w2 = w2_ref[...]
    b2 = b2_ref[0]

    def body(c, carry):
        r0 = pl.multiple_of(c * tc, tc)
        xs = x_ref[pl.ds(r0, tc), :]                       # (tc, D)
        # Layer 1 on the MXU, hidden-major so rows land on the lane axis:
        # h[k, i] = sum_d W1[d, k] * x[i, d]   (f32 accumulation).
        h = jax.lax.dot_general(
            w1t, xs, (((1,), (1,)), ((), ())),
            preferred_element_type=jnp.float32)            # (H, tc)
        h = jnp.maximum(h + b1, 0.0)
        # Dropout(0.3): identity at inference (PyTorch eval()) time.
        # TODO(synk): training-mode dropout would need pltpu.prng_seed /
        # pltpu.prng_random_bits masking here.
        # Layer 2 (H -> 1): VPU multiply + sublane (XLU) reduction -> (1, tc).
        s = jnp.sum(h * w2, axis=0, keepdims=True) + b2    # lane-dense row
        o_ref[pl.ds(c, 1), :] = s.astype(o_ref.dtype)
        return carry

    jax.lax.fori_loop(0, n_chunks, body, 0, unroll=True)


def ranking_model_forward(x, w1, b1, w2, b2, *, tm=8192,
                          compute_dtype=jnp.bfloat16):
    """RankingModel forward (eval-mode: Dropout(0.3) is identity).

    x : (batch, list_len, input_dim) float32
    w1: (input_dim, hidden)   b1: (hidden,)
    w2: (hidden, 1)           b2: (1,)
    compute_dtype: dtype for the streamed x / W1 (default bf16, f32 accum).
      Use compute_dtype=jnp.float32 (or None) for bit-accuracy checks.
    Returns scores of shape (batch, list_len), float32.
    """
    B, L, D = x.shape
    H = w1.shape[1]
    N = B * L

    tc = _TC
    d_pad = _round_up(D, _LANES)
    itemsize = jnp.dtype(compute_dtype if compute_dtype is not None
                         else x.dtype).itemsize
    cap = _vmem_capacity_bytes()

    # Row tile: big enough that the per-step x DMA dwarfs the ~0.35us grid-step
    # overhead, small enough that the double-buffered x stream stays within
    # ~1/4 of VMEM; multiple of 8*tc so the (tm//tc, tc) output block stays
    # (8, 128)-legal when the grid has more than one step.
    step = 8 * tc                                           # 2048 rows
    vmem_rows = max(step, ((cap // 4) // (2 * d_pad * itemsize)) // step * step)
    tm_eff = max(step, min(_round_up(int(tm), step), vmem_rows))

    if N <= tm_eff:
        tm_eff = _round_up(max(N, 1), tc)                   # single grid step
        N_pad = tm_eff
        grid = 1
    else:
        # Target >= 8 steps (>= 4 per TensorCore on v7x) when possible.
        tm_eff = min(tm_eff, max(step, _round_up(pl.cdiv(N, 8), step)))
        N_pad = _round_up(N, tm_eff)
        grid = N_pad // tm_eff
        if grid % 2:                                        # even split, 2 TCs
            grid += 1
            N_pad = grid * tm_eff

    x_flat = x.reshape(N, D)
    if N_pad != N:
        x_flat = jnp.pad(x_flat, ((0, N_pad - N), (0, 0)))
    if compute_dtype is not None:
        x_flat = x_flat.astype(compute_dtype)
        w1_c = w1.astype(compute_dtype)
    else:
        w1_c = w1

    # TODO(synk): if the producer can emit x feature-major / lane-dense, take
    # it directly instead of this row-major contract (recovers ~4x effective
    # HBM BW for D=32); do NOT transpose x here (extra HBM round trip).
    w1_t = jnp.transpose(w1_c)                              # (H, D), tiny
    b1_col = b1.reshape(H, 1).astype(jnp.float32)
    w2_col = w2.reshape(H, 1).astype(jnp.float32)
    b2_s = b2.reshape(1).astype(jnp.float32)                # SMEM scalar

    # VMEM budget (double-buffered, lane/sublane padded) so the scoped limit
    # never silently caps the pipeline (64 MiB matters on v7x).
    h_sub = _round_up(H, _SUBLANES)
    out_rows = _round_up(max(tm_eff // tc, 1), _SUBLANES)
    est = (2 * tm_eff * d_pad * itemsize                    # x tiles
           + 2 * h_sub * d_pad * itemsize                   # W1^T buffers
           + 4 * h_sub * _LANES * 4                         # b1 / w2 columns
           + 2 * out_rows * tc * 4                          # output slabs
           + 8 * h_sub * tc * 4)                            # chunk temporaries
    vmem_limit = int(min(max(2 * est, 32 << 20), int(0.9 * cap)))
    vmem_limit = min(max(vmem_limit, est + (4 << 20)), cap)
    # TODO(synk): on v7x with large D*H, add pipeline_mode=pl.Buffered(1) to
    # the resident W1^T/b1/w2 specs to drop their second (unused) buffer.

    cost = pl.CostEstimate(
        flops=2 * N_pad * D * H + 3 * N_pad * H,
        transcendentals=0,
        bytes_accessed=int(N_pad * d_pad * itemsize         # x at lane pitch
                           + H * d_pad * itemsize           # W1^T
                           + 2 * H * 4 + 4                  # b1, w2, b2
                           + N_pad * 4),                    # dense scores
    )

    kernel = functools.partial(_mlp_kernel, tc=tc)
    out = pl.pallas_call(
        kernel,
        out_shape=jax.ShapeDtypeStruct((N_pad // tc, tc), jnp.float32),
        grid_spec=pltpu.PrefetchScalarGridSpec(
            num_scalar_prefetch=0,
            grid=(grid,),
            in_specs=[
                pl.BlockSpec((tm_eff, D), lambda i: (i, 0)),   # streamed rows
                pl.BlockSpec((H, D), lambda i: (0, 0)),        # W1^T, resident
                pl.BlockSpec((H, 1), lambda i: (0, 0)),        # b1 column
                pl.BlockSpec((H, 1), lambda i: (0, 0)),        # w2 column
                pl.BlockSpec(memory_space=pltpu.MemorySpace.SMEM),  # b2 scalar
            ],
            out_specs=pl.BlockSpec((tm_eff // tc, tc), lambda i: (i, 0)),
        ),
        compiler_params=pltpu.CompilerParams(
            dimension_semantics=("parallel",),
            vmem_limit_bytes=vmem_limit,
        ),
        cost_estimate=cost,
    )(x_flat, w1_t, b1_col, w2_col, b2_s)

    return out.reshape(N_pad)[:N].reshape(B, L)


def init_params(key, input_dim, hidden_dim):
    """Deterministic parameter init (uniform, PyTorch-Linear-style bounds)."""
    k1, k2, k3, k4 = jax.random.split(key, 4)
    bound1 = 1.0 / jnp.sqrt(input_dim)
    bound2 = 1.0 / jnp.sqrt(hidden_dim)
    w1 = jax.random.uniform(k1, (input_dim, hidden_dim), jnp.float32, -bound1, bound1)
    b1 = jax.random.uniform(k2, (hidden_dim,), jnp.float32, -bound1, bound1)
    w2 = jax.random.uniform(k3, (hidden_dim, 1), jnp.float32, -bound2, bound2)
    b2 = jax.random.uniform(k4, (1,), jnp.float32, -bound2, bound2)
    return w1, b1, w2, b2


if __name__ == "__main__":
    batch, list_len, input_dim, hidden_dim = 2, 8, 32, 64

    key = jax.random.PRNGKey(0)
    kx, kp, kx2 = jax.random.split(key, 3)
    x = jax.random.normal(kx, (batch, list_len, input_dim), jnp.float32)
    w1, b1, w2, b2 = init_params(kp, input_dim, hidden_dim)

    # Pure-JAX reference of the same forward pass (eval-mode dropout = identity).
    def ref_forward(inp, cast=None):
        xf = inp.reshape(-1, input_dim)
        w1c = w1
        if cast is not None:
            xf = xf.astype(cast)
            w1c = w1.astype(cast)
        h = jnp.maximum(jnp.dot(xf, w1c, preferred_element_type=jnp.float32) + b1, 0.0)
        return (h @ w2 + b2).reshape(inp.shape[0], inp.shape[1])

    # Default path: bf16 x/W1 stream, f32 accumulation.
    scores = jax.block_until_ready(ranking_model_forward(x, w1, b1, w2, b2))
    assert scores.shape == (batch, list_len)
    assert jnp.allclose(scores, ref_forward(x), atol=3e-2, rtol=3e-2)
    assert jnp.allclose(scores, ref_forward(x, jnp.bfloat16), atol=5e-3, rtol=5e-3)

    # Bit-accuracy path (f32 end to end).
    s32 = jax.block_until_ready(
        ranking_model_forward(x, w1, b1, w2, b2, compute_dtype=jnp.float32))
    assert jnp.allclose(s32, ref_forward(x), atol=1e-4, rtol=1e-4)

    # Padding path (N = 15 rows, not a multiple of the 256-row chunk).
    x2 = jax.random.normal(kx2, (3, 5, input_dim), jnp.float32)
    s2 = jax.block_until_ready(
        ranking_model_forward(x2, w1, b1, w2, b2, compute_dtype=jnp.float32))
    assert s2.shape == (3, 5)
    assert jnp.allclose(s2, ref_forward(x2), atol=1e-4, rtol=1e-4)

    print("KERNEL_OK")
</pallas_src>

<mosaic_0001>
module attributes {stable_mosaic.version = 11 : i64} {
  func.func @_mlp_kernel(%arg0: i32, %arg1: memref<256x32xbf16, #tpu.memory_space<vmem>>, %arg2: memref<64x32xbf16, #tpu.memory_space<vmem>>, %arg3: memref<64x1xf32, #tpu.memory_space<vmem>>, %arg4: memref<64x1xf32, #tpu.memory_space<vmem>>, %arg5: memref<1xf32, #tpu.memory_space<smem>>, %arg6: memref<1x256xf32, #tpu.memory_space<vmem>>) attributes {dimension_semantics = [#tpu.dimension_semantics<parallel>], iteration_bounds = array<i64: 1>, scalar_prefetch = 0 : i64, scratch_operands = 0 : i64, tpu.core_type = #tpu.core_type<tc>, window_params = [{transform_indices = @transform_0, window_bounds = array<i64: 256, 32>}, {pipeline_mode = #tpu.pipeline_mode<synchronous>, transform_indices = @transform_1, window_bounds = array<i64: 64, 32>}, {pipeline_mode = #tpu.pipeline_mode<synchronous>, transform_indices = @transform_2, window_bounds = array<i64: 64, 1>}, {pipeline_mode = #tpu.pipeline_mode<synchronous>, transform_indices = @transform_3, window_bounds = array<i64: 64, 1>}, {transform_indices = @transform_4, window_bounds = array<i64: 1>}, {transform_indices = @transform_5, window_bounds = array<i64: 1, 256>}]} {
    %c0 = arith.constant 0 : index
    %c0_0 = arith.constant 0 : index
    %0 = vector.load %arg2[%c0, %c0_0] : memref<64x32xbf16, #tpu.memory_space<vmem>>, vector<64x32xbf16>
    %c0_1 = arith.constant 0 : index
    %c0_2 = arith.constant 0 : index
    %1 = vector.load %arg3[%c0_1, %c0_2] : memref<64x1xf32, #tpu.memory_space<vmem>>, vector<64x1xf32>
    %c0_3 = arith.constant 0 : index
    %c0_4 = arith.constant 0 : index
    %2 = vector.load %arg4[%c0_3, %c0_4] : memref<64x1xf32, #tpu.memory_space<vmem>>, vector<64x1xf32>
    %c0_5 = arith.constant 0 : index
    %3 = memref.load %arg5[%c0_5] : memref<1xf32, #tpu.memory_space<smem>>
    %c0_i32 = arith.constant 0 : i32
    %c256_i32 = arith.constant 256 : i32
    %4 = arith.muli %c0_i32, %c256_i32 : i32
    %5 = tpu.assume_multiple %4, 256 : i32
    %6 = arith.index_cast %5 : i32 to index
    %c0_6 = arith.constant 0 : index
    %7 = vector.load %arg1[%6, %c0_6] : memref<256x32xbf16, #tpu.memory_space<vmem>>, vector<256x32xbf16>
    %cst = arith.constant dense<0.000000e+00> : vector<64x256xf32>
    %8 = tpu.matmul %0, %7, %cst {dimension_numbers = #tpu.dot_dimension_numbers<[1], [1], [0], [0], [0, 0, 1, 0], [], []>} : vector<64x32xbf16>, vector<256x32xbf16>, vector<64x256xf32> -> vector<64x256xf32>
    %9 = vector.broadcast %1 : vector<64x1xf32> to vector<64x256xf32>
    %10 = arith.addf %8, %9 : vector<64x256xf32>
    %cst_7 = arith.constant 0.000000e+00 : f32
    %11 = vector.broadcast %cst_7 : f32 to vector<64x256xf32>
    %12 = arith.maximumf %10, %11 : vector<64x256xf32>
    %13 = vector.broadcast %2 : vector<64x1xf32> to vector<64x256xf32>
    %14 = arith.mulf %12, %13 : vector<64x256xf32>
    %cst_8 = arith.constant dense<0.000000e+00> : vector<256xf32>
    %15 = vector.multi_reduction <add>, %14, %cst_8 [0] : vector<64x256xf32> to vector<256xf32>
    %16 = vector.shape_cast %15 : vector<256xf32> to vector<1x256xf32>
    %17 = vector.broadcast %3 : f32 to vector<1x256xf32>
    %18 = arith.addf %16, %17 : vector<1x256xf32>
    %19 = arith.index_cast %c0_i32 : i32 to index
    %c0_9 = arith.constant 0 : index
    %20 = vector.load %arg6[%19, %c0_9] : memref<1x256xf32, #tpu.memory_space<vmem>>, vector<1x256xf32>
    tpu.vector_store %arg6[%19, %c0_9], %18 {strides = array<i32>} : memref<1x256xf32, #tpu.memory_space<vmem>>, vector<1x256xf32>,
    %c1_i32 = arith.constant 1 : i32
    return
  }
  func.func @transform_0(%arg0: i32) -> (i32, i32) {
    %c0_i32 = arith.constant 0 : i32
    %c0_i32_0 = arith.constant 0 : i32
    return %arg0, %c0_i32 : i32, i32
  }
  func.func @transform_1(%arg0: i32) -> (i32, i32) {
    %c0_i32 = arith.constant 0 : i32
    %c0_i32_0 = arith.constant 0 : i32
    %c0_i32_1 = arith.constant 0 : i32
    return %c0_i32, %c0_i32_0 : i32, i32
  }
  func.func @transform_2(%arg0: i32) -> (i32, i32) {
    %c0_i32 = arith.constant 0 : i32
    %c0_i32_0 = arith.constant 0 : i32
    %c0_i32_1 = arith.constant 0 : i32
    return %c0_i32, %c0_i32_0 : i32, i32
  }
  func.func @transform_3(%arg0: i32) -> (i32, i32) {
    %c0_i32 = arith.constant 0 : i32
    %c0_i32_0 = arith.constant 0 : i32
    %c0_i32_1 = arith.constant 0 : i32
    return %c0_i32, %c0_i32_0 : i32, i32
  }
  func.func @transform_4(%arg0: i32) -> i32 {
    %c0_i32 = arith.constant 0 : i32
    %c0_i32_0 = arith.constant 0 : i32
    return %c0_i32 : i32
  }
  func.func @transform_5(%arg0: i32) -> (i32, i32) {
    %c0_i32 = arith.constant 0 : i32
    %c0_i32_0 = arith.constant 0 : i32
    return %arg0, %c0_i32 : i32, i32
  }
}

</mosaic_0001>

<llo_original>
// kernel: tpu_custom_call.1
$region0: #{tpu_custom_call.1}
  #allocation0 [shape = 'u32[]', space=smem, size = 0x4, offset = 0x4, fixed_abs, tag = 'smem constant byte address 0x4 - core index']
  #allocation1 [shape = 'u32[144,128]{1,0:T(1,128)}', space=vmem, size = 0x12000, scoped, tag = 'internal scratch']
  #allocation2 [shape = 'f32[1]{0:T(128)S(6)}', space=smem, size = 0x200, scoped, tag = 'scoped memory for tpu_custom_call.1']
  %s0 = inlined_call_operand.vmem [shape: bf16[256,32], index: 0, kind: input, shape index: {}]
  %s1 = inlined_call_operand.vmem [shape: bf16[64,32], index: 1, kind: input, shape index: {}]
  %s2 = inlined_call_operand.vmem [shape: f32[64,1], index: 2, kind: input, shape index: {}]
  %s3 = inlined_call_operand.vmem [shape: f32[64,1], index: 3, kind: input, shape index: {}]
  %s4 = inlined_call_operand.<no memory space> [shape: f32[1], index: 4, kind: input, shape index: {}]
  %s5 = inlined_call_operand.hbm [shape: f32[1,256], index: 5, kind: output, shape index: {}]
  %s6 = sld [smem:[#allocation0]]
  $region30: #{tpu_custom_call.1} parent=0
    _
  %s8 = ssub.s32 1, %s6
  %s9 = scalar_select 0, %s8, %s6
  %10 = sst [smem:[#allocation2]] %s4
  $region1: #{tpu_custom_call.1} parent=0
    #allocation3 [shape = 'u8[1024]{0}', space=vmem, size = 0x400, scoped, tag = 'output window, operand 0, single buffered']
    #allocation4 [shape = 's32[1]{0}', space=sflag, size = 0x4, scoped, tag = 'scoped memory for tpu_custom_call.1']
    %11 = vsyncpa [#allocation4], 0
    // Predicated region
    $region2: #{tpu_custom_call.1} parent=1 // pred_check
      _
    $region3: #{tpu_custom_call.1} parent=1 // pred_check_branch
      %13 = sbr.rel (0) target = $region5
    $region4: #{tpu_custom_call.1} parent=1 // pred_region
      _
    $region5: #{tpu_custom_call.1} parent=1 // pred_fallthru
      _
    // Predicated region
    $region6: #{tpu_custom_call.1} parent=1 // pred_check
      _
    $region7: #{tpu_custom_call.1} parent=1 // pred_check_branch
      %15 = sbr.rel (0) target = $region9
    $region8: #{tpu_custom_call.1} parent=1 // pred_region
      _
    $region9: #{tpu_custom_call.1} parent=1 // pred_fallthru
      _
    // Predicated region
    $region10: #{tpu_custom_call.1} parent=1 // pred_check
      _
    $region11: #{tpu_custom_call.1} parent=1 // pred_check_branch
      %17 = sbr.rel (0) target = $region13
    $region12: #{tpu_custom_call.1} parent=1 // pred_region
      _
    $region13: #{tpu_custom_call.1} parent=1 // pred_fallthru
      _
    // Predicated region
    $region14: #{tpu_custom_call.1} parent=1 // pred_check
      _
    $region15: #{tpu_custom_call.1} parent=1 // pred_check_branch
      %19 = sbr.rel (0) target = $region17
    $region16: #{tpu_custom_call.1} parent=1 // pred_region
      _
    $region17: #{tpu_custom_call.1} parent=1 // pred_fallthru
      _
    // Predicated region
    $region18: #{tpu_custom_call.1} parent=1 // pred_check
      _
    $region19: #{tpu_custom_call.1} parent=1 // pred_check_branch
      %21 = sbr.rel (0) target = $region21
    $region20: #{tpu_custom_call.1} parent=1 // pred_region
      _
    $region21: #{tpu_custom_call.1} parent=1 // pred_fallthru
      _
    %v23 = vld [vmem:[%s1] sm:$0xf]
    %v24 = vld [vmem:[%s1 + $0x4] sm:$0xf]
    %v25 = vld [vmem:[%s1 + $0x8] sm:$0xf]
    %v26 = vld [vmem:[%s1 + $0xc] sm:$0xf]
    %v27 = vld [vmem:[%s1 + $0x10] sm:$0xf]
    %v28 = vld [vmem:[%s1 + $0x14] sm:$0xf]
    %v29 = vld [vmem:[%s1 + $0x18] sm:$0xf]
    %v30 = vld [vmem:[%s1 + $0x1c] sm:$0xf]
    %v31 = vld [vmem:[%s2] sm:$0xff]
    %v32 = vld [vmem:[%s2 + $0x8] sm:$0xff]
    %v33 = vld [vmem:[%s2 + $0x10] sm:$0xff]
    %v34 = vld [vmem:[%s2 + $0x18] sm:$0xff]
    %v35 = vld [vmem:[%s2 + $0x20] sm:$0xff]
    %v36 = vld [vmem:[%s2 + $0x28] sm:$0xff]
    %v37 = vld [vmem:[%s2 + $0x30] sm:$0xff]
    %v38 = vld [vmem:[%s2 + $0x38] sm:$0xff]
    %v39 = vld [vmem:[%s3] sm:$0xff]
    %v40 = vld [vmem:[%s3 + $0x8] sm:$0xff]
    %v41 = vld [vmem:[%s3 + $0x10] sm:$0xff]
    %v42 = vld [vmem:[%s3 + $0x18] sm:$0xff]
    %v43 = vld [vmem:[%s3 + $0x20] sm:$0xff]
    %v44 = vld [vmem:[%s3 + $0x28] sm:$0xff]
    %v45 = vld [vmem:[%s3 + $0x30] sm:$0xff]
    %v46 = vld [vmem:[%s3 + $0x38] sm:$0xff]
    %s47 = sld [smem:[#allocation2]]
    %v48 = vld [vmem:[%s0] sm:$0xf]
    %v49 = vld [vmem:[%s0 + $0x4] sm:$0xf]
    %v50 = vld [vmem:[%s0 + $0x8] sm:$0xf]
    %v51 = vld [vmem:[%s0 + $0xc] sm:$0xf]
    %v52 = vld [vmem:[%s0 + $0x10] sm:$0xf]
    %v53 = vld [vmem:[%s0 + $0x14] sm:$0xf]
    %v54 = vld [vmem:[%s0 + $0x18] sm:$0xf]
    %v55 = vld [vmem:[%s0 + $0x1c] sm:$0xf]
    %v56 = vld [vmem:[%s0 + $0x20] sm:$0xf]
    %v57 = vld [vmem:[%s0 + $0x24] sm:$0xf]
    %v58 = vld [vmem:[%s0 + $0x28] sm:$0xf]
    %v59 = vld [vmem:[%s0 + $0x2c] sm:$0xf]
    %v60 = vld [vmem:[%s0 + $0x30] sm:$0xf]
    %v61 = vld [vmem:[%s0 + $0x34] sm:$0xf]
    %v62 = vld [vmem:[%s0 + $0x38] sm:$0xf]
    %v63 = vld [vmem:[%s0 + $0x3c] sm:$0xf]
    %v64 = vld [vmem:[%s0 + $0x40] sm:$0xf]
    %v65 = vld [vmem:[%s0 + $0x44] sm:$0xf]
    %v66 = vld [vmem:[%s0 + $0x48] sm:$0xf]
    %v67 = vld [vmem:[%s0 + $0x4c] sm:$0xf]
    %v68 = vld [vmem:[%s0 + $0x50] sm:$0xf]
    %v69 = vld [vmem:[%s0 + $0x54] sm:$0xf]
    %v70 = vld [vmem:[%s0 + $0x58] sm:$0xf]
    %v71 = vld [vmem:[%s0 + $0x5c] sm:$0xf]
    %v72 = vld [vmem:[%s0 + $0x60] sm:$0xf]
    %v73 = vld [vmem:[%s0 + $0x64] sm:$0xf]
    %v74 = vld [vmem:[%s0 + $0x68] sm:$0xf]
    %v75 = vld [vmem:[%s0 + $0x6c] sm:$0xf]
    %v76 = vld [vmem:[%s0 + $0x70] sm:$0xf]
    %v77 = vld [vmem:[%s0 + $0x74] sm:$0xf]
    %v78 = vld [vmem:[%s0 + $0x78] sm:$0xf]
    %v79 = vld [vmem:[%s0 + $0x7c] sm:$0xf]
    %81 = vset.pattern.permute.xlu0 0
    %82 = vperm.xlu0 %81, %v31
    %v83 = vpop.permute.xlu0 %82
    %86 = vset.pattern.permute.xlu0 0
    %87 = vperm.xlu0 %86, %v32
    %v88 = vpop.permute.xlu0 %87
    %91 = vset.pattern.permute.xlu0 0
    %92 = vperm.xlu0 %91, %v33
    %v93 = vpop.permute.xlu0 %92
    %96 = vset.pattern.permute.xlu0 0
    %97 = vperm.xlu0 %96, %v34
    %v98 = vpop.permute.xlu0 %97
    %101 = vset.pattern.permute.xlu0 0
    %102 = vperm.xlu0 %101, %v35
    %v103 = vpop.permute.xlu0 %102
    %106 = vset.pattern.permute.xlu0 0
    %107 = vperm.xlu0 %106, %v36
    %v108 = vpop.permute.xlu0 %107
    %111 = vset.pattern.permute.xlu0 0
    %112 = vperm.xlu0 %111, %v37
    %v113 = vpop.permute.xlu0 %112
    %116 = vset.pattern.permute.xlu0 0
    %117 = vperm.xlu0 %116, %v38
    %v118 = vpop.permute.xlu0 %117
    %v128 = vunpack.c.l.b16 %v23
    %v129 = vunpack.c.l.b16 %v24
    %v130 = vunpack.c.l.b16 %v25
    %v131 = vunpack.c.l.b16 %v26
    %v132 = vunpack.c.l.b16 %v27
    %v133 = vunpack.c.l.b16 %v28
    %v134 = vunpack.c.l.b16 %v29
    %v135 = vunpack.c.l.b16 %v30
    %v136 = vpack.c.b16 %v129, %v128
    %v137 = vpack.c.b16 %v131, %v130
    %v138 = vpack.c.b16 %v133, %v132
    %v139 = vpack.c.b16 %v135, %v134
    %v172 = vunpack.c.l.b16 %v48
    %v173 = vunpack.c.l.b16 %v49
    %v174 = vunpack.c.l.b16 %v50
    %v175 = vunpack.c.l.b16 %v51
    %v176 = vunpack.c.l.b16 %v52
    %v177 = vunpack.c.l.b16 %v53
    %v178 = vunpack.c.l.b16 %v54
    %v179 = vunpack.c.l.b16 %v55
    %v180 = vunpack.c.l.b16 %v56
    %v181 = vunpack.c.l.b16 %v57
    %v182 = vunpack.c.l.b16 %v58
    %v183 = vunpack.c.l.b16 %v59
    %v184 = vunpack.c.l.b16 %v60
    %v185 = vunpack.c.l.b16 %v61
    %v186 = vunpack.c.l.b16 %v62
    %v187 = vunpack.c.l.b16 %v63
    %v188 = vunpack.c.l.b16 %v64
    %v189 = vunpack.c.l.b16 %v65
    %v190 = vunpack.c.l.b16 %v66
    %v191 = vunpack.c.l.b16 %v67
    %v192 = vunpack.c.l.b16 %v68
    %v193 = vunpack.c.l.b16 %v69
    %v194 = vunpack.c.l.b16 %v70
    %v195 = vunpack.c.l.b16 %v71
    %v196 = vunpack.c.l.b16 %v72
    %v197 = vunpack.c.l.b16 %v73
    %v198 = vunpack.c.l.b16 %v74
    %v199 = vunpack.c.l.b16 %v75
    %v200 = vunpack.c.l.b16 %v76
    %v201 = vunpack.c.l.b16 %v77
    %v202 = vunpack.c.l.b16 %v78
    %v203 = vunpack.c.l.b16 %v79
    %v204 = vpack.c.b16 %v173, %v172
    %v205 = vpack.c.b16 %v175, %v174
    %v206 = vpack.c.b16 %v177, %v176
    %v207 = vpack.c.b16 %v179, %v178
    %v208 = vpack.c.b16 %v181, %v180
    %v209 = vpack.c.b16 %v183, %v182
    %v210 = vpack.c.b16 %v185, %v184
    %v211 = vpack.c.b16 %v187, %v186
    %v212 = vpack.c.b16 %v189, %v188
    %v213 = vpack.c.b16 %v191, %v190
    %v214 = vpack.c.b16 %v193, %v192
    %v215 = vpack.c.b16 %v195, %v194
    %v216 = vpack.c.b16 %v197, %v196
    %v217 = vpack.c.b16 %v199, %v198
    %v218 = vpack.c.b16 %v201, %v200
    %v219 = vpack.c.b16 %v203, %v202
    %vm220 = vcmask 261120
    %v222 = vsel %vm220, %v136, 0
    %v225 = vsel %vm220, %v137, 0
    %v228 = vsel %vm220, %v138, 0
    %v231 = vsel %vm220, %v139, 0
    %v234 = vsel %vm220, %v204, 0
    %v237 = vsel %vm220, %v205, 0
    %v240 = vsel %vm220, %v206, 0
    %v243 = vsel %vm220, %v207, 0
    %v246 = vsel %vm220, %v208, 0
    %v249 = vsel %vm220, %v209, 0
    %v252 = vsel %vm220, %v210, 0
    %v255 = vsel %vm220, %v211, 0
    %v258 = vsel %vm220, %v212, 0
    %v261 = vsel %vm220, %v213, 0
    %v264 = vsel %vm220, %v214, 0
    %v267 = vsel %vm220, %v215, 0
    %v270 = vsel %vm220, %v216, 0
    %v273 = vsel %vm220, %v217, 0
    %v276 = vsel %vm220, %v218, 0
    %v279 = vsel %vm220, %v219, 0
    %281 = vmatprep.subr.bf16.mxu0 0
    %282 = vmatpush1.bf16.xpose.msra.mxu0 %v255
    %283 = vmatprep.subr.bf16.mxu0 0
    %284 = vmatpush1.bf16.xpose.msra.mxu0 %v252
    %285 = vmatprep.subr.bf16.mxu0 0
    %286 = vmatpush1.bf16.xpose.msra.mxu0 %v249
    %287 = vmatprep.subr.bf16.mxu0 0
    %288 = vmatpush1.bf16.xpose.msra.mxu0 %v246
    %289 = vmatprep.subr.bf16.mxu0 0
    %290 = vmatpush1.bf16.xpose.msra.mxu0 %v243
    %291 = vmatprep.subr.bf16.mxu0 0
    %292 = vmatpush1.bf16.xpose.msra.mxu0 %v240
    %293 = vmatprep.subr.bf16.mxu0 0
    %294 = vmatpush1.bf16.xpose.msra.mxu0 %v237
    %295 = vmatprep.subr.bf16.mxu0 0
    %296 = vmatpush1.bf16.xpose.msra.mxu0 %v234
    %297 = vmatprep.subr.bf16.mxu0 0
    %298 = vmatpush2.bf16.xpose.msra.mxu0 %v279
    %299 = vmatprep.subr.bf16.mxu0 0
    %300 = vmatpush2.bf16.xpose.msra.mxu0 %v276
    %301 = vmatprep.subr.bf16.mxu0 0
    %302 = vmatpush2.bf16.xpose.msra.mxu0 %v273
    %303 = vmatprep.subr.bf16.mxu0 0
    %304 = vmatpush2.bf16.xpose.msra.mxu0 %v270
    %305 = vmatprep.subr.bf16.mxu0 0
    %306 = vmatpush2.bf16.xpose.msra.mxu0 %v267
    %307 = vmatprep.subr.bf16.mxu0 0
    %308 = vmatpush2.bf16.xpose.msra.mxu0 %v264
    %309 = vmatprep.subr.bf16.mxu0 0
    %310 = vmatpush2.bf16.xpose.msra.mxu0 %v261
    %311 = vmatprep.subr.bf16.mxu0 0
    %312 = vmatpush2.bf16.xpose.msra.mxu0 %v258
    %313 = vmatprep.mubr.bf16.mxu0 0
    %314 = vmatmul.mubr.bf16.gmra.mxu0 %v222
    %v315 = vpop.f32.mrf.mxu0
    %v316 = vadd.f32 %v83, %v315
    %v317 = vpop.f32.mrf.mxu0
    %v318 = vadd.f32 %v83, %v317
    %v319 = vpop.f32.mrf.mxu0
    %v320 = vadd.f32 %v88, %v319
    %v321 = vpop.f32.mrf.mxu0
    %v322 = vadd.f32 %v88, %v321
    %323 = vmatprep.mubr.bf16.mxu0 0
    %324 = vmatmul.mubr.bf16.gmra.mxu0 %v225
    %v325 = vpop.f32.mrf.mxu0
    %v326 = vadd.f32 %v93, %v325
    %v327 = vpop.f32.mrf.mxu0
    %v328 = vadd.f32 %v93, %v327
    %v329 = vpop.f32.mrf.mxu0
    %v330 = vadd.f32 %v98, %v329
    %v331 = vpop.f32.mrf.mxu0
    %v332 = vadd.f32 %v98, %v331
    %333 = vmatprep.mubr.bf16.mxu0 0
    %334 = vmatmul.mubr.bf16.gmra.mxu0 %v228
    %v335 = vpop.f32.mrf.mxu0
    %v336 = vadd.f32 %v103, %v335
    %v337 = vpop.f32.mrf.mxu0
    %v338 = vadd.f32 %v103, %v337
    %v339 = vpop.f32.mrf.mxu0
    %v340 = vadd.f32 %v108, %v339
    %v341 = vpop.f32.mrf.mxu0
    %v342 = vadd.f32 %v108, %v341
    %343 = vmatprep.mubr.bf16.mxu0 0
    %344 = vmatmul.mubr.bf16.gmra.mxu0 %v231
    %v345 = vpop.f32.mrf.mxu0
    %v346 = vadd.f32 %v113, %v345
    %v347 = vpop.f32.mrf.mxu0
    %v348 = vadd.f32 %v113, %v347
    %v349 = vpop.f32.mrf.mxu0
    %v350 = vadd.f32 %v118, %v349
    %v351 = vpop.f32.mrf.mxu0
    %v352 = vadd.f32 %v118, %v351
    %353 = vdwg.mxu0
    %v354 = vmax.f32 %v316, 0.0
    %v355 = vmax.f32 %v318, 0.0
    %v356 = vmax.f32 %v320, 0.0
    %v357 = vmax.f32 %v322, 0.0
    %v358 = vmax.f32 %v326, 0.0
    %v359 = vmax.f32 %v328, 0.0
    %v360 = vmax.f32 %v330, 0.0
    %v361 = vmax.f32 %v332, 0.0
    %v362 = vmax.f32 %v336, 0.0
    %v363 = vmax.f32 %v338, 0.0
    %v364 = vmax.f32 %v340, 0.0
    %v365 = vmax.f32 %v342, 0.0
    %v366 = vmax.f32 %v346, 0.0
    %v367 = vmax.f32 %v348, 0.0
    %v368 = vmax.f32 %v350, 0.0
    %v369 = vmax.f32 %v352, 0.0
    %371 = vset.pattern.permute.xlu0 0
    %372 = vperm.xlu0 %371, %v39
    %v373 = vpop.permute.xlu0 %372
    %376 = vset.pattern.permute.xlu0 0
    %377 = vperm.xlu0 %376, %v40
    %v378 = vpop.permute.xlu0 %377
    %381 = vset.pattern.permute.xlu0 0
    %382 = vperm.xlu0 %381, %v41
    %v383 = vpop.permute.xlu0 %382
    %386 = vset.pattern.permute.xlu0 0
    %387 = vperm.xlu0 %386, %v42
    %v388 = vpop.permute.xlu0 %387
    %391 = vset.pattern.permute.xlu0 0
    %392 = vperm.xlu0 %391, %v43
    %v393 = vpop.permute.xlu0 %392
    %396 = vset.pattern.permute.xlu0 0
    %397 = vperm.xlu0 %396, %v44
    %v398 = vpop.permute.xlu0 %397
    %401 = vset.pattern.permute.xlu0 0
    %402 = vperm.xlu0 %401, %v45
    %v403 = vpop.permute.xlu0 %402
    %406 = vset.pattern.permute.xlu0 0
    %407 = vperm.xlu0 %406, %v46
    %v408 = vpop.permute.xlu0 %407
    %v410 = vmul.f32 %v354, %v373
    %v411 = vmul.f32 %v355, %v373
    %v412 = vmul.f32 %v356, %v378
    %v413 = vmul.f32 %v357, %v378
    %v414 = vmul.f32 %v358, %v383
    %v415 = vmul.f32 %v359, %v383
    %v416 = vmul.f32 %v360, %v388
    %v417 = vmul.f32 %v361, %v388
    %v418 = vmul.f32 %v362, %v393
    %v419 = vmul.f32 %v363, %v393
    %v420 = vmul.f32 %v364, %v398
    %v421 = vmul.f32 %v365, %v398
    %v422 = vmul.f32 %v366, %v403
    %v423 = vmul.f32 %v367, %v403
    %v424 = vmul.f32 %v368, %v408
    %v425 = vmul.f32 %v369, %v408
    %v426 = vadd.f32 %v410, %v412
    %v427 = vadd.f32 %v426, %v414
    %v428 = vadd.f32 %v427, %v416
    %v429 = vadd.f32 %v428, %v418
    %v430 = vadd.f32 %v429, %v420
    %v431 = vadd.f32 %v430, %v422
    %v432 = vadd.f32 %v431, %v424
    %v433 = vrot.slane %v432, 4
    %v434 = vadd.f32 %v432, %v433
    %v435 = vrot.slane %v434, 2
    %v436 = vadd.f32 %v434, %v435
    %v437 = vrot.slane %v436, 1
    %v438 = vadd.f32 %v436, %v437
    %v439 = vadd.f32 %v411, %v413
    %v440 = vadd.f32 %v439, %v415
    %v441 = vadd.f32 %v440, %v417
    %v442 = vadd.f32 %v441, %v419
    %v443 = vadd.f32 %v442, %v421
    %v444 = vadd.f32 %v443, %v423
    %v445 = vadd.f32 %v444, %v425
    %v446 = vrot.slane %v445, 4
    %v447 = vadd.f32 %v445, %v446
    %v448 = vrot.slane %v447, 2
    %v449 = vadd.f32 %v447, %v448
    %v450 = vrot.slane %v449, 1
    %v451 = vadd.f32 %v449, %v450
    %v452 = vstv %s47
    %v453 = vadd.f32 %v438, %v452
    %v454 = vadd.f32 %v451, %v452
    %v457 = vcombine.low %v453, %v454
    %v459 = vunpack.c.l.s4 1966171168
    %v460 = vunpack.c.0.s8 %v459
    %v461 = vlaneseq
    %v462 = vshrl.u32 %v461, 7
    %v463 = vsub.s32 %v460, %v462
    %v464 = vrot.slane %v457, %v463
    %v466 = vunpack.c.l.s4 1966171168
    %v467 = vunpack.c.0.s8 %v466
    %v468 = vlaneseq
    %v469 = vshrl.u32 %v468, 7
    %v470 = vsub.s32 %v467, %v469
    %v471 = vrot.slane %v464, %v470
    %v473 = vlaneseq
    %vm474 = vcmp.ge.s32.totalorder %v473, 0
    %vm475 = vcmp.lt.s32.totalorder %v473, 256
    %vm476 = vmand %vm474, %vm475
    %477 = vst.msk [vmem:[#allocation3] sm:$0x3] %vm476, %v471
    // Predicated region
    $region22: #{tpu_custom_call.1} parent=1 // pred_check
      _
    $region23: #{tpu_custom_call.1} parent=1 // pred_check_branch
      %479 = sbr.rel (0) target = $region25
    $region24: #{tpu_custom_call.1} parent=1 // pred_region
      %s481 = ssub.s32 32, 32
      %482 = vsyncadd [#allocation4], %s481
      %s484 = sshll.u32 [#allocation3], 4
      %s485 = int_to_ptr.vmem [resolvable:$true] %s484
      %487 = dma.vmem_to_hbm [thread:$0]  %s485, 32, %s5, [#allocation4]
    $region25: #{tpu_custom_call.1} parent=1 // pred_fallthru
      _
    // Predicated region
    $region26: #{tpu_custom_call.1} parent=1 // pred_check
      _
    $region27: #{tpu_custom_call.1} parent=1 // pred_check_branch
      %489 = sbr.rel (0) target = $region29
    $region28: #{tpu_custom_call.1} parent=1 // pred_region
      %490 = dma.done [#allocation4], 32
    $region29: #{tpu_custom_call.1} parent=1 // pred_fallthru
      _
    %491 = vsyncpa [#allocation4], 1

</llo_original>
